<compile_context>
chip_gen: v6e
topology: v6e:2x2x1
jax: 0.10.0
libtpu: 0.0.40
codegen_flags: <defaults>
</compile_context>

<pallas_src>
import math

import jax
import jax.numpy as jnp
from jax.experimental import pallas as pl
from jax.experimental.pallas import tpu as pltpu


def strnn_kernel(coef_ref,      # VMEM (TB, N, 4)  [al*at, al*bt, bl*at, bl*bt]
                 loc_emb_ref,   # VMEM (TB, N, H)  gathered location embeddings
                 hx_ref,        # VMEM (TB, H)     hx rows (hx transposed)
                 v_ref,         # VMEM (4, H)      [s_u@W_thu, s_u@W_thl, s_l@W_thu, s_l@W_thl]
                 w_ih_t_ref,    # VMEM (H, H)      W_ih^T
                 out_ref):      # VMEM (TB, H)
    c = coef_ref[...]                                    # (TB, N, 4)
    v = v_ref[...]                                       # (4, H)

    # Effective per-step row vector (1^T Sld_i) Ttd_i, built on the VPU from the
    # four batch-independent V rows. No (H,H) materialization, no loc-path matmul.
    w = (c[:, :, 0:1] * v[0:1, :]
         + c[:, :, 1:2] * v[1:2, :]
         + c[:, :, 2:3] * v[2:3, :]
         + c[:, :, 3:4] * v[3:4, :])                     # (TB, N, H)

    # loc_vec_b = sum_i w_{b,i} . e_{b,i}
    prod = w * loc_emb_ref[...]                          # (TB, N, H)
    loc_vec = jnp.sum(jnp.sum(prod, axis=2, keepdims=True), axis=1)   # (TB, 1)

    # usr_vec^T per sequence: hx^T @ W_ih^T  -> one tall MXU matmul for the batch.
    usr = jnp.dot(hx_ref[...], w_ih_t_ref[...],
                  preferred_element_type=jnp.float32)    # (TB, H)

    out_ref[...] = jax.nn.sigmoid(loc_vec + usr)         # (TB, H), lane-dense write


def strnn_forward_batched(params, td_upper, td_lower, ld_upper, ld_lower, loc, hx):
    """Batched STRNN forward.

    td_*/ld_* : (B, N) float, loc : (B, N) int32, hx : (B, H, 1) float.
    Returns (B, H, 1) float32.
    """
    H = params["weight_th_upper"].shape[0]
    B, N = loc.shape

    td_upper = td_upper.astype(jnp.float32)
    td_lower = td_lower.astype(jnp.float32)
    ld_upper = ld_upper.astype(jnp.float32)
    ld_lower = ld_lower.astype(jnp.float32)

    # Per-step scalar coefficients (divisions folded once, outside the kernel).
    at = td_upper / (td_upper + td_lower)
    bt = td_lower / (td_upper + td_lower)
    al = ld_upper / (ld_upper + ld_lower)
    bl = ld_lower / (ld_upper + ld_lower)
    coef = jnp.stack([al * at, al * bt, bl * at, bl * bt], axis=-1)   # (B, N, 4)

    # Batch-independent collapsed loc-path vectors: V_xy = (1^T W_sh_x) @ W_th_y.
    w_thu = params["weight_th_upper"].astype(jnp.float32)
    w_thl = params["weight_th_lower"].astype(jnp.float32)
    s_u = jnp.sum(params["weight_sh_upper"].astype(jnp.float32), axis=0)   # (H,)
    s_l = jnp.sum(params["weight_sh_lower"].astype(jnp.float32), axis=0)   # (H,)
    v = jnp.stack([s_u @ w_thu, s_u @ w_thl, s_l @ w_thu, s_l @ w_thl],
                  axis=0)                                                  # (4, H)

    # Derive W_ih^T per forward (no stale pre-transposed parameter copy).
    w_ih_t = params["weight_ih"].astype(jnp.float32).T                     # (H, H)

    # TODO(synk): for large embedding tables, gather loc_emb inside the kernel
    # (scalar-prefetched indices + DMA gather) instead of this wrapper jnp.take.
    loc_emb = jnp.take(params["location_weight"].astype(jnp.float32),
                       loc, axis=0)                                        # (B, N, H)
    hx_rows = hx.astype(jnp.float32).reshape(B, H)                         # (B, H)

    # One grid step for small B; tile the batch at 512 sequences for large B.
    TB = B if B <= 512 else 512
    num_tiles = pl.cdiv(B, TB)

    cost = pl.CostEstimate(
        flops=int(9 * B * N * H + 2 * B * H * H),
        transcendentals=int(B * H),
        bytes_accessed=int(4 * (B * N * 4 + B * N * H + 2 * B * H + 4 * H + H * H)),
    )

    out_rows = pl.pallas_call(
        strnn_kernel,
        grid=(num_tiles,),
        out_shape=jax.ShapeDtypeStruct((B, H), jnp.float32),
        in_specs=[
            pl.BlockSpec((TB, N, 4), lambda b: (b, 0, 0)),   # coef
            pl.BlockSpec((TB, N, H), lambda b: (b, 0, 0)),   # loc_emb
            pl.BlockSpec((TB, H),    lambda b: (b, 0)),      # hx rows
            pl.BlockSpec((4, H),     lambda b: (0, 0)),      # V (resident)
            pl.BlockSpec((H, H),     lambda b: (0, 0)),      # W_ih^T (resident)
        ],
        out_specs=pl.BlockSpec((TB, H), lambda b: (b, 0)),
        compiler_params=pltpu.CompilerParams(
            dimension_semantics=(("parallel",) if num_tiles > 1
                                 else ("arbitrary",))),
        cost_estimate=cost,
    )(coef, loc_emb, hx_rows, v, w_ih_t)

    return out_rows.reshape(B, H, 1)


def strnn_forward(params, td_upper, td_lower, ld_upper, ld_lower, loc, hx):
    """Single-sequence forward matching the PyTorch signature: returns (H, 1)."""
    out = strnn_forward_batched(
        params,
        td_upper[None], td_lower[None], ld_upper[None], ld_lower[None],
        loc[None], hx[None])
    return out[0]


def strnn_forward_ref(params, td_upper, td_lower, ld_upper, ld_lower, loc, hx):
    """Pure-JAX reference mirroring the PyTorch forward literally."""
    loc_emb = jnp.take(params["location_weight"], loc, axis=0)           # (N, H)

    tu = td_upper[:, None, None]
    tl = td_lower[:, None, None]
    lu = ld_upper[:, None, None]
    ll = ld_lower[:, None, None]
    Ttd = (params["weight_th_upper"][None] * tu
           + params["weight_th_lower"][None] * tl) / (tu + tl)           # (N, H, H)
    Sld = (params["weight_sh_upper"][None] * lu
           + params["weight_sh_lower"][None] * ll) / (lu + ll)           # (N, H, H)

    e = loc_emb[:, :, None]                                              # (N, H, 1)
    v = jnp.einsum("nij,njk->nik", Ttd, e)                               # (N, H, 1)
    sv = jnp.einsum("nij,njk->nik", Sld, v)                              # (N, H, 1)
    loc_vec = jnp.sum(sv)                                                # scalar

    usr_vec = params["weight_ih"] @ hx                                   # (H, 1)
    return jax.nn.sigmoid(loc_vec + usr_vec)


def init_params(key, hidden_size, loc_cnt, user_cnt):
    stdv = 1.0 / math.sqrt(hidden_size)
    ks = jax.random.split(key, 7)
    u = lambda k, shape: jax.random.uniform(k, shape, jnp.float32, -stdv, stdv)
    return {
        "weight_ih":        u(ks[0], (hidden_size, hidden_size)),
        "weight_th_upper":  u(ks[1], (hidden_size, hidden_size)),
        "weight_th_lower":  u(ks[2], (hidden_size, hidden_size)),
        "weight_sh_upper":  u(ks[3], (hidden_size, hidden_size)),
        "weight_sh_lower":  u(ks[4], (hidden_size, hidden_size)),
        "location_weight":  u(ks[5], (loc_cnt, hidden_size)),
        "permanet_weight":  u(ks[6], (user_cnt, hidden_size)),  # unused in forward
    }


if __name__ == "__main__":
    hidden_size = 32
    loc_cnt = 16
    user_cnt = 4
    loc_len = 8    # sequence length (number of visited locations)
    batch = 4      # batched users/timesteps fused into one pallas_call step

    key = jax.random.PRNGKey(0)
    kp, k1, k2, k3, k4, k5, k6 = jax.random.split(key, 7)

    params = init_params(kp, hidden_size, loc_cnt, user_cnt)

    # positive distances/time-deltas (avoid div-by-zero, as in real STRNN data)
    td_u_b = jax.random.uniform(k1, (batch, loc_len), jnp.float32, 0.1, 1.0)
    td_l_b = jax.random.uniform(k2, (batch, loc_len), jnp.float32, 0.1, 1.0)
    ld_u_b = jax.random.uniform(k3, (batch, loc_len), jnp.float32, 0.1, 1.0)
    ld_l_b = jax.random.uniform(k4, (batch, loc_len), jnp.float32, 0.1, 1.0)
    loc_b = jax.random.randint(k5, (batch, loc_len), 0, loc_cnt, dtype=jnp.int32)
    hx_b = jax.random.normal(k6, (batch, hidden_size, 1), jnp.float32)

    # --- single-sequence forward (matches the PyTorch module signature) ---
    out1 = strnn_forward(params, td_u_b[0], td_l_b[0], ld_u_b[0], ld_l_b[0],
                         loc_b[0], hx_b[0])
    out1 = jax.block_until_ready(out1)
    ref1 = strnn_forward_ref(params, td_u_b[0], td_l_b[0], ld_u_b[0], ld_l_b[0],
                             loc_b[0], hx_b[0])
    ref1 = jax.block_until_ready(ref1)
    assert out1.shape == (hidden_size, 1)
    assert jnp.allclose(out1, ref1, rtol=1e-3, atol=1e-3), (out1, ref1)

    # --- batched forward (one pallas_call, whole batch fused into one step) ---
    out_b = strnn_forward_batched(params, td_u_b, td_l_b, ld_u_b, ld_l_b,
                                  loc_b, hx_b)
    out_b = jax.block_until_ready(out_b)
    ref_b = jnp.stack([
        strnn_forward_ref(params, td_u_b[i], td_l_b[i], ld_u_b[i], ld_l_b[i],
                          loc_b[i], hx_b[i])
        for i in range(batch)])
    ref_b = jax.block_until_ready(ref_b)
    assert out_b.shape == (batch, hidden_size, 1)
    assert jnp.allclose(out_b, ref_b, rtol=1e-3, atol=1e-3), (out_b, ref_b)

    print("KERNEL_OK")
</pallas_src>

<mosaic_0001>
module attributes {stable_mosaic.version = 11 : i64} {
  func.func @strnn_kernel(%arg0: i32, %arg1: memref<1x8x4xf32, #tpu.memory_space<vmem>>, %arg2: memref<1x8x32xf32, #tpu.memory_space<vmem>>, %arg3: memref<1x32xf32, #tpu.memory_space<vmem>>, %arg4: memref<4x32xf32, #tpu.memory_space<vmem>>, %arg5: memref<32x32xf32, #tpu.memory_space<vmem>>, %arg6: memref<1x32xf32, #tpu.memory_space<vmem>>) attributes {dimension_semantics = [#tpu.dimension_semantics<arbitrary>], iteration_bounds = array<i64: 1>, scalar_prefetch = 0 : i64, scratch_operands = 0 : i64, tpu.core_type = #tpu.core_type<tc>, window_params = [{transform_indices = @transform_0, window_bounds = array<i64: 1, 8, 4>}, {transform_indices = @transform_1, window_bounds = array<i64: 1, 8, 32>}, {transform_indices = @transform_2, window_bounds = array<i64: 1, 32>}, {pipeline_mode = #tpu.pipeline_mode<synchronous>, transform_indices = @transform_3, window_bounds = array<i64: 4, 32>}, {pipeline_mode = #tpu.pipeline_mode<synchronous>, transform_indices = @transform_4, window_bounds = array<i64: 32, 32>}, {transform_indices = @transform_5, window_bounds = array<i64: 1, 32>}]} {
    %c0 = arith.constant 0 : index
    %c0_0 = arith.constant 0 : index
    %c0_1 = arith.constant 0 : index
    %0 = vector.load %arg1[%c0, %c0_0, %c0_1] : memref<1x8x4xf32, #tpu.memory_space<vmem>>, vector<1x8x4xf32>
    %c0_2 = arith.constant 0 : index
    %c0_3 = arith.constant 0 : index
    %1 = vector.load %arg4[%c0_2, %c0_3] : memref<4x32xf32, #tpu.memory_space<vmem>>, vector<4x32xf32>
    %2 = vector.extract_strided_slice %0 {offsets = [0, 0, 0], sizes = [1, 8, 1], strides = [1, 1, 1]} : vector<1x8x4xf32> to vector<1x8x1xf32>
    %3 = vector.extract_strided_slice %1 {offsets = [0, 0], sizes = [1, 32], strides = [1, 1]} : vector<4x32xf32> to vector<1x32xf32>
    %4 = vector.shape_cast %3 : vector<1x32xf32> to vector<1x1x32xf32>
    %5 = vector.broadcast %2 : vector<1x8x1xf32> to vector<1x8x32xf32>
    %6 = vector.broadcast %4 : vector<1x1x32xf32> to vector<1x8x32xf32>
    %7 = arith.mulf %5, %6 : vector<1x8x32xf32>
    %8 = vector.extract_strided_slice %0 {offsets = [0, 0, 1], sizes = [1, 8, 1], strides = [1, 1, 1]} : vector<1x8x4xf32> to vector<1x8x1xf32>
    %9 = vector.extract_strided_slice %1 {offsets = [1, 0], sizes = [1, 32], strides = [1, 1]} : vector<4x32xf32> to vector<1x32xf32>
    %10 = vector.shape_cast %9 : vector<1x32xf32> to vector<1x1x32xf32>
    %11 = vector.broadcast %8 : vector<1x8x1xf32> to vector<1x8x32xf32>
    %12 = vector.broadcast %10 : vector<1x1x32xf32> to vector<1x8x32xf32>
    %13 = arith.mulf %11, %12 : vector<1x8x32xf32>
    %14 = arith.addf %7, %13 : vector<1x8x32xf32>
    %15 = vector.extract_strided_slice %0 {offsets = [0, 0, 2], sizes = [1, 8, 1], strides = [1, 1, 1]} : vector<1x8x4xf32> to vector<1x8x1xf32>
    %16 = vector.extract_strided_slice %1 {offsets = [2, 0], sizes = [1, 32], strides = [1, 1]} : vector<4x32xf32> to vector<1x32xf32>
    %17 = vector.shape_cast %16 : vector<1x32xf32> to vector<1x1x32xf32>
    %18 = vector.broadcast %15 : vector<1x8x1xf32> to vector<1x8x32xf32>
    %19 = vector.broadcast %17 : vector<1x1x32xf32> to vector<1x8x32xf32>
    %20 = arith.mulf %18, %19 : vector<1x8x32xf32>
    %21 = arith.addf %14, %20 : vector<1x8x32xf32>
    %22 = vector.extract_strided_slice %0 {offsets = [0, 0, 3], sizes = [1, 8, 1], strides = [1, 1, 1]} : vector<1x8x4xf32> to vector<1x8x1xf32>
    %23 = vector.extract_strided_slice %1 {offsets = [3, 0], sizes = [1, 32], strides = [1, 1]} : vector<4x32xf32> to vector<1x32xf32>
    %24 = vector.shape_cast %23 : vector<1x32xf32> to vector<1x1x32xf32>
    %25 = vector.broadcast %22 : vector<1x8x1xf32> to vector<1x8x32xf32>
    %26 = vector.broadcast %24 : vector<1x1x32xf32> to vector<1x8x32xf32>
    %27 = arith.mulf %25, %26 : vector<1x8x32xf32>
    %28 = arith.addf %21, %27 : vector<1x8x32xf32>
    %c0_4 = arith.constant 0 : index
    %c0_5 = arith.constant 0 : index
    %c0_6 = arith.constant 0 : index
    %29 = vector.load %arg2[%c0_4, %c0_5, %c0_6] : memref<1x8x32xf32, #tpu.memory_space<vmem>>, vector<1x8x32xf32>
    %30 = arith.mulf %28, %29 : vector<1x8x32xf32>
    %cst = arith.constant dense<0.000000e+00> : vector<1x8xf32>
    %31 = vector.multi_reduction <add>, %30, %cst [2] : vector<1x8x32xf32> to vector<1x8xf32>
    %32 = vector.shape_cast %31 : vector<1x8xf32> to vector<1x8x1xf32>
    %cst_7 = arith.constant dense<0.000000e+00> : vector<1x1xf32>
    %33 = vector.multi_reduction <add>, %32, %cst_7 [1] : vector<1x8x1xf32> to vector<1x1xf32>
    %c0_8 = arith.constant 0 : index
    %c0_9 = arith.constant 0 : index
    %34 = vector.load %arg3[%c0_8, %c0_9] : memref<1x32xf32, #tpu.memory_space<vmem>>, vector<1x32xf32>
    %c0_10 = arith.constant 0 : index
    %c0_11 = arith.constant 0 : index
    %35 = vector.load %arg5[%c0_10, %c0_11] : memref<32x32xf32, #tpu.memory_space<vmem>>, vector<32x32xf32>
    %cst_12 = arith.constant dense<0.000000e+00> : vector<1x32xf32>
    %36 = tpu.matmul %34, %35, %cst_12 {dimension_numbers = #tpu.dot_dimension_numbers<[1], [0], [0], [1], [0, 0, 1, 1], [], []>} : vector<1x32xf32>, vector<32x32xf32>, vector<1x32xf32> -> vector<1x32xf32>
    %37 = vector.broadcast %33 : vector<1x1xf32> to vector<1x32xf32>
    %38 = arith.addf %37, %36 : vector<1x32xf32>
    %39 = arith.negf %38 : vector<1x32xf32>
    %40 = math.exp %39 : vector<1x32xf32>
    %cst_13 = arith.constant 1.000000e+00 : f32
    %41 = vector.broadcast %cst_13 : f32 to vector<1x32xf32>
    %42 = arith.addf %41, %40 : vector<1x32xf32>
    %43 = arith.divf %41, %42 : vector<1x32xf32>
    %c0_14 = arith.constant 0 : index
    %c0_15 = arith.constant 0 : index
    %44 = vector.load %arg6[%c0_14, %c0_15] : memref<1x32xf32, #tpu.memory_space<vmem>>, vector<1x32xf32>
    tpu.vector_store %arg6[%c0_14, %c0_15], %43 {strides = array<i32>} : memref<1x32xf32, #tpu.memory_space<vmem>>, vector<1x32xf32>,
    return
  }
  func.func @transform_0(%arg0: i32) -> (i32, i32, i32) {
    %c0_i32 = arith.constant 0 : i32
    %c0_i32_0 = arith.constant 0 : i32
    %c0_i32_1 = arith.constant 0 : i32
    return %arg0, %c0_i32, %c0_i32_0 : i32, i32, i32
  }
  func.func @transform_1(%arg0: i32) -> (i32, i32, i32) {
    %c0_i32 = arith.constant 0 : i32
    %c0_i32_0 = arith.constant 0 : i32
    %c0_i32_1 = arith.constant 0 : i32
    return %arg0, %c0_i32, %c0_i32_0 : i32, i32, i32
  }
  func.func @transform_2(%arg0: i32) -> (i32, i32) {
    %c0_i32 = arith.constant 0 : i32
    %c0_i32_0 = arith.constant 0 : i32
    return %arg0, %c0_i32 : i32, i32
  }
  func.func @transform_3(%arg0: i32) -> (i32, i32) {
    %c0_i32 = arith.constant 0 : i32
    %c0_i32_0 = arith.constant 0 : i32
    %c0_i32_1 = arith.constant 0 : i32
    return %c0_i32, %c0_i32_0 : i32, i32
  }
  func.func @transform_4(%arg0: i32) -> (i32, i32) {
    %c0_i32 = arith.constant 0 : i32
    %c0_i32_0 = arith.constant 0 : i32
    %c0_i32_1 = arith.constant 0 : i32
    return %c0_i32, %c0_i32_0 : i32, i32
  }
  func.func @transform_5(%arg0: i32) -> (i32, i32) {
    %c0_i32 = arith.constant 0 : i32
    %c0_i32_0 = arith.constant 0 : i32
    return %arg0, %c0_i32 : i32, i32
  }
}

</mosaic_0001>

<llo_original>
// kernel: tpu_custom_call.1
$region0: #{tpu_custom_call.1}
  #allocation0 [shape = 'u32[]', space=smem, size = 0x4, offset = 0x4, fixed_abs, tag = 'smem constant byte address 0x4 - core index']
  #allocation1 [shape = 'u32[144,128]{1,0:T(1,128)}', space=vmem, size = 0x12000, scoped, tag = 'internal scratch']
  %s0 = inlined_call_operand.vmem [shape: f32[1,8,4], index: 0, kind: input, shape index: {}]
  %s1 = inlined_call_operand.vmem [shape: f32[1,8,32], index: 1, kind: input, shape index: {}]
  %s2 = inlined_call_operand.vmem [shape: f32[1,32], index: 2, kind: input, shape index: {}]
  %s3 = inlined_call_operand.vmem [shape: f32[4,32], index: 3, kind: input, shape index: {}]
  %s4 = inlined_call_operand.hbm [shape: f32[32,32], index: 4, kind: input, shape index: {}]
  %s5 = inlined_call_operand.hbm [shape: f32[1,32], index: 5, kind: output, shape index: {}]
  %s6 = sld [smem:[#allocation0]]
  $region34: #{tpu_custom_call.1} parent=0
    _
  %s8 = ssub.s32 1, %s6
  %s9 = scalar_select 0, %s8, %s6
  $region1: #{tpu_custom_call.1} parent=0
    #allocation2 [shape = 'u8[16384]{0}', space=vmem, size = 0x4000, scoped, tag = 'input window, operand 4, single buffered']
    #allocation3 [shape = 's32[1]{0}', space=sflag, size = 0x4, scoped, tag = 'scoped memory for tpu_custom_call.1']
    #allocation4 [shape = 's32[1]{0}', space=sflag, size = 0x4, scoped, tag = 'scoped memory for tpu_custom_call.1']
    #allocation5 [shape = 'u8[512]{0}', space=vmem, size = 0x400, scoped, tag = 'output window, operand 0, single buffered']
    %10 = vsyncpa [#allocation3], 0
    %11 = vsyncpa [#allocation4], 0
    // Predicated region
    $region2: #{tpu_custom_call.1} parent=1 // pred_check
      _
    $region3: #{tpu_custom_call.1} parent=1 // pred_check_branch
      %13 = sbr.rel (0) target = $region5
    $region4: #{tpu_custom_call.1} parent=1 // pred_region
      _
    $region5: #{tpu_custom_call.1} parent=1 // pred_fallthru
      _
    // Predicated region
    $region6: #{tpu_custom_call.1} parent=1 // pred_check
      _
    $region7: #{tpu_custom_call.1} parent=1 // pred_check_branch
      %15 = sbr.rel (0) target = $region9
    $region8: #{tpu_custom_call.1} parent=1 // pred_region
      _
    $region9: #{tpu_custom_call.1} parent=1 // pred_fallthru
      _
    // Predicated region
    $region10: #{tpu_custom_call.1} parent=1 // pred_check
      _
    $region11: #{tpu_custom_call.1} parent=1 // pred_check_branch
      %17 = sbr.rel (0) target = $region13
    $region12: #{tpu_custom_call.1} parent=1 // pred_region
      _
    $region13: #{tpu_custom_call.1} parent=1 // pred_fallthru
      _
    // Predicated region
    $region14: #{tpu_custom_call.1} parent=1 // pred_check
      _
    $region15: #{tpu_custom_call.1} parent=1 // pred_check_branch
      %19 = sbr.rel (0) target = $region17
    $region16: #{tpu_custom_call.1} parent=1 // pred_region
      _
    $region17: #{tpu_custom_call.1} parent=1 // pred_fallthru
      _
    // Predicated region
    $region18: #{tpu_custom_call.1} parent=1 // pred_check
      _
    $region19: #{tpu_custom_call.1} parent=1 // pred_check_branch
      %21 = sbr.rel (0) target = $region21
    $region20: #{tpu_custom_call.1} parent=1 // pred_region
      %s23 = ssub.s32 512, 512
      %24 = vsyncadd [#allocation3], %s23
      %s25 = sshll.u32 [#allocation2], 4
      %s26 = int_to_ptr.vmem [resolvable:$true] %s25
      %31 = dma.hbm_to_vmem [thread:$0]  %s4, 512, %s26, [#allocation3], 128, 128, 8
    $region21: #{tpu_custom_call.1} parent=1 // pred_fallthru
      _
    // Predicated region
    $region22: #{tpu_custom_call.1} parent=1 // pred_check
      _
    $region23: #{tpu_custom_call.1} parent=1 // pred_check_branch
      %33 = sbr.rel (0) target = $region25
    $region24: #{tpu_custom_call.1} parent=1 // pred_region
      %34 = dma.done [#allocation3], 512
    $region25: #{tpu_custom_call.1} parent=1 // pred_fallthru
      _
    %v35 = vld [vmem:[%s0] sm:$0xff]
    %v36 = vld [vmem:[%s3] sm:$0xf]
    %38 = vset.pattern.permute.xlu0 0
    %39 = vperm.xlu0 %38, %v35
    %v40 = vpop.permute.xlu0 %39
    %v42 = vlaneseq
    %v43 = vshrl.u32 %v42, 7
    %v44 = vsub.s32 0, %v43
    %v45 = vrot.slane %v36, %v44
    %v46 = vmul.f32 %v40, %v45
    %47 = vset.pattern.permute.xlu0 1
    %48 = vperm.xlu0 %47, %v35
    %v49 = vpop.permute.xlu0 %48
    %v51 = vlaneseq
    %v52 = vshrl.u32 %v51, 7
    %v53 = vsub.s32 1, %v52
    %v54 = vrot.slane %v36, %v53
    %v55 = vmul.f32 %v49, %v54
    %v56 = vadd.f32 %v46, %v55
    %57 = vset.pattern.permute.xlu0 2
    %58 = vperm.xlu0 %57, %v35
    %v59 = vpop.permute.xlu0 %58
    %v61 = vlaneseq
    %v62 = vshrl.u32 %v61, 7
    %v63 = vsub.s32 2, %v62
    %v64 = vrot.slane %v36, %v63
    %v65 = vmul.f32 %v59, %v64
    %v66 = vadd.f32 %v56, %v65
    %67 = vset.pattern.permute.xlu0 3
    %68 = vperm.xlu0 %67, %v35
    %v69 = vpop.permute.xlu0 %68
    %v71 = vlaneseq
    %v72 = vshrl.u32 %v71, 7
    %v73 = vsub.s32 3, %v72
    %v74 = vrot.slane %v36, %v73
    %v75 = vmul.f32 %v69, %v74
    %v76 = vadd.f32 %v66, %v75
    %v77 = vld [vmem:[%s1] sm:$0xff]
    %v78 = vmul.f32 %v76, %v77
    %vm79 = vcmask 261120
    %v80 = vsel %vm79, %v78, 0.0
    %81 = vadd.xlane.f32.xlu0 %v80
    %v82 = vpop.xlane.xlu0 %81
    %v83 = vrot.slane %v82, 4
    %v84 = vadd.f32 %v82, %v83
    %v85 = vrot.slane %v84, 2
    %v86 = vadd.f32 %v84, %v85
    %v87 = vrot.slane %v86, 1
    %v88 = vadd.f32 %v86, %v87
    %v89 = vld [vmem:[%s2] sm:$0x1]
    %v90 = vld [vmem:[#allocation2] sm:$0xff]
    %v91 = vld [vmem:[#allocation2 + $0x8] sm:$0xff]
    %v92 = vld [vmem:[#allocation2 + $0x10] sm:$0xff]
    %v93 = vld [vmem:[#allocation2 + $0x18] sm:$0xff]
    %v95 = vsel %vm79, %v89, 0
    %97 = vmatprep.subr.mxu0 0.0
    %98 = vmatpush1.msra.mxu0 0.0
    %99 = vmatprep.subr.mxu0 0.0
    %100 = vmatpush1.msra.mxu0 0.0
    %101 = vmatprep.subr.mxu0 0.0
    %102 = vmatpush1.msra.mxu0 0.0
    %103 = vmatprep.subr.mxu0 0.0
    %104 = vmatpush1.msra.mxu0 0.0
    %105 = vmatprep.subr.mxu0 0.0
    %106 = vmatpush1.msra.mxu0 0.0
    %107 = vmatprep.subr.mxu0 0.0
    %108 = vmatpush1.msra.mxu0 0.0
    %109 = vmatprep.subr.mxu0 0.0
    %110 = vmatpush1.msra.mxu0 0.0
    %111 = vmatprep.subr.mxu0 0.0
    %112 = vmatpush1.msra.mxu0 0.0
    %113 = vmatprep.subr.mxu0 0.0
    %114 = vmatpush1.msra.mxu0 0.0
    %115 = vmatprep.subr.mxu0 0.0
    %116 = vmatpush1.msra.mxu0 0.0
    %117 = vmatprep.subr.mxu0 0.0
    %118 = vmatpush1.msra.mxu0 0.0
    %119 = vmatprep.subr.mxu0 0.0
    %120 = vmatpush1.msra.mxu0 0.0
    %121 = vmatprep.subr.mxu0 0.0
    %122 = vmatpush1.msra.mxu0 %v93
    %123 = vmatprep.subr.mxu0 0.0
    %124 = vmatpush1.msra.mxu0 %v92
    %125 = vmatprep.subr.mxu0 0.0
    %126 = vmatpush1.msra.mxu0 %v91
    %127 = vmatprep.subr.mxu0 0.0
    %128 = vmatpush1.msra.mxu0 %v90
    %129 = vmatprep.subr.mxu0 0.0
    %130 = vmatpush2.msra.mxu0 0.0
    %131 = vmatprep.subr.mxu0 0.0
    %132 = vmatpush2.msra.mxu0 0.0
    %133 = vmatprep.subr.mxu0 0.0
    %134 = vmatpush2.msra.mxu0 0.0
    %135 = vmatprep.subr.mxu0 0.0
    %136 = vmatpush2.msra.mxu0 0.0
    %137 = vmatprep.subr.mxu0 0.0
    %138 = vmatpush2.msra.mxu0 0.0
    %139 = vmatprep.subr.mxu0 0.0
    %140 = vmatpush2.msra.mxu0 0.0
    %141 = vmatprep.subr.mxu0 0.0
    %142 = vmatpush2.msra.mxu0 0.0
    %143 = vmatprep.subr.mxu0 0.0
    %144 = vmatpush2.msra.mxu0 0.0
    %145 = vmatprep.subr.mxu0 0.0
    %146 = vmatpush2.msra.mxu0 0.0
    %147 = vmatprep.subr.mxu0 0.0
    %148 = vmatpush2.msra.mxu0 0.0
    %149 = vmatprep.subr.mxu0 0.0
    %150 = vmatpush2.msra.mxu0 0.0
    %151 = vmatprep.subr.mxu0 0.0
    %152 = vmatpush2.msra.mxu0 0.0
    %153 = vmatprep.subr.mxu0 0.0
    %154 = vmatpush2.msra.mxu0 0.0
    %155 = vmatprep.subr.mxu0 0.0
    %156 = vmatpush2.msra.mxu0 0.0
    %157 = vmatprep.subr.mxu0 0.0
    %158 = vmatpush2.msra.mxu0 0.0
    %159 = vmatprep.subr.mxu0 0.0
    %160 = vmatpush2.msra.mxu0 0.0
    %161 = vmatprep.mubr.f32.mxu0 0.0
    %162 = vmatmul.mubr.f32.gmra.mxu0 %v95
    %v163 = vpop.f32.mrf.mxu0
    %v164 = vadd.f32 0.0, %v163
    %v165 = vpop.f32.mrf.mxu0
    %166 = vdwg.mxu0
    %v167 = vadd.f32 %v88, %v164
    %v168 = vxor.u32 %v167, 2147483648
    %v169 = vmul.f32 %v168, 1.442695
    %v170 = vpow.pop %v169
    %v171 = vadd.f32 %v170, 1.0
    %v172 = vrcp.pop %v171
    %v173 = vmul.f32 1.0, %v172
    %vm174 = vcmask 253952
    %175 = vst.msk [vmem:[#allocation5] sm:$0x1] %vm174, %v173
    // Predicated region
    $region26: #{tpu_custom_call.1} parent=1 // pred_check
      _
    $region27: #{tpu_custom_call.1} parent=1 // pred_check_branch
      %177 = sbr.rel (0) target = $region29
    $region28: #{tpu_custom_call.1} parent=1 // pred_region
      %s179 = ssub.s32 16, 16
      %180 = vsyncadd [#allocation4], %s179
      %s182 = sshll.u32 [#allocation5], 4
      %s183 = int_to_ptr.vmem [resolvable:$true] %s182
      %185 = dma.vmem_to_hbm [thread:$0]  %s183, 16, %s5, [#allocation4]
    $region29: #{tpu_custom_call.1} parent=1 // pred_fallthru
      _
    // Predicated region
    $region30: #{tpu_custom_call.1} parent=1 // pred_check
      _
    $region31: #{tpu_custom_call.1} parent=1 // pred_check_branch
      %187 = sbr.rel (0) target = $region33
    $region32: #{tpu_custom_call.1} parent=1 // pred_region
      %188 = dma.done [#allocation4], 16
    $region33: #{tpu_custom_call.1} parent=1 // pred_fallthru
      _
    %189 = vsyncpa [#allocation3], 1
    %190 = vsyncpa [#allocation4], 1

</llo_original>
